<compile_context>
chip_gen: v5e
topology: v5e:2x2
jax: 0.10.0
libtpu: 0.0.40
codegen_flags: <defaults>
</compile_context>

<pallas_src>
import jax
import jax.numpy as jnp
from jax.experimental import pallas as pl
from jax.experimental.pallas import tpu as pltpu


def _make_shift_basis(weight_size, shift_range):
    """basis[s, n, m] = 1 iff m == (n + shift_range - s) mod N.

    With it, the module's circular cross-correlation becomes
        w_out = sum_s shift[:, s:s+1] * (w @ basis[s])
    i.e. S tiny MXU matmuls with unambiguous direction semantics.
    """
    N = weight_size
    S = 2 * shift_range + 1
    n = jnp.arange(N)
    basis = jnp.zeros((S, N, N), jnp.float32)
    for s in range(S):
        basis = basis.at[s, n, (n + shift_range - s) % N].set(1.0)
    return basis


def make_head_kernel(key_size, weight_size, shift_range):
    K = key_size
    N = weight_size
    S = 2 * shift_range + 1
    EPS = 1e-8  # torch cosine_similarity eps

    def recip(v):
        # EUP reciprocal (separate VLIW slot), ~2^-12 relative error.
        return pl.reciprocal(v, approx=True)

    def kernel(x_ref, mem_ref, w_all_ref, b_all_ref, prevw_ref, basis_ref,
               out_ref, wstate_ref):
        t = pl.program_id(0)

        # Initialize the carried addressing weight once; afterwards it lives in
        # VMEM scratch across the whole recurrence (P3/P4 accumulator pattern).
        @pl.when(t == 0)
        def _():
            wstate_ref[...] = prevw_ref[...].astype(jnp.float32)

        x = x_ref[...].astype(jnp.float32)          # (B, H)
        W = w_all_ref[...]                          # (H, K+3+S)
        b = b_all_ref[...]                          # (1, K+3+S)

        # ---- all five Linear layers as one MXU matmul ----
        lin = jnp.dot(x, W, preferred_element_type=jnp.float32) + b  # (B, K+3+S)

        key = jnp.maximum(lin[:, 0:K], 0.0)                           # relu
        beta_z = lin[:, K:K + 1]
        beta = jnp.maximum(beta_z, 0.0) + jnp.log1p(jnp.exp(-jnp.abs(beta_z)))  # softplus
        blending = 1.0 / (1.0 + jnp.exp(-lin[:, K + 1:K + 2]))        # sigmoid
        shift_z = lin[:, K + 2:K + 2 + S]
        shift_z = shift_z - jnp.max(shift_z, axis=1, keepdims=True)
        shift_e = jnp.exp(shift_z)
        shift = shift_e * recip(jnp.sum(shift_e, axis=1, keepdims=True))  # softmax (B, S)
        gamma = jnp.maximum(lin[:, K + 2 + S:K + 3 + S], 0.0) + 1.0       # relu + 1

        # ---- content addressing: cosine similarity + softmax over N ----
        mem = mem_ref[...].astype(jnp.float32)                        # (B, N, K)
        # At B=2, N=8, K=16 the VPU broadcast-reduce is as fast as a batched
        # MXU einsum and avoids relayouts; switch to einsum('bqk,bnk->bqn')
        # when B or N grow.
        dot = jnp.sum(key[:, None, :] * mem, axis=-1)                 # (B, N)
        knorm = jnp.sqrt(jnp.sum(key * key, axis=-1, keepdims=True))  # (B, 1)
        mnorm = jnp.sqrt(jnp.sum(mem * mem, axis=-1))                 # (B, N)
        cos = dot * recip(jnp.maximum(knorm, EPS) * jnp.maximum(mnorm, EPS))
        z = beta * cos
        z = z - jnp.max(z, axis=1, keepdims=True)
        e = jnp.exp(z)
        w = e * recip(jnp.sum(e, axis=1, keepdims=True))              # (B, N)

        # ---- interpolation with the carried weight ----
        prev_w = wstate_ref[...]
        w = blending * w + (1.0 - blending) * prev_w

        # ---- circular convolutional shift: S permutation-basis MXU matmuls ----
        shifted = jnp.zeros_like(w)
        for s in range(S):                                            # static taps
            shifted = shifted + shift[:, s:s + 1] * jnp.dot(
                w, basis_ref[s], preferred_element_type=jnp.float32)
        w = shifted

        # ---- sharpening ----
        w = jnp.exp(gamma * jnp.log(w))                               # w ** gamma (w >= 0)
        w = w * recip(jnp.sum(w, axis=1, keepdims=True))

        wstate_ref[...] = w
        out_ref[t] = w.astype(out_ref.dtype)   # resident output, written back once

    return kernel


def head_forward_seq(xs, memories, prev_weight, W_all, b_all, shift_range=1):
    """Run the NTM head for T steps inside a single pallas_call."""
    T, B, H = xs.shape
    _, _, N, K = memories.shape
    S = 2 * shift_range + 1
    P = K + 3 + S
    assert W_all.shape == (H, P) and b_all.shape == (1, P)

    basis = _make_shift_basis(N, shift_range)
    kernel = make_head_kernel(K, N, shift_range)

    grid_spec = pltpu.PrefetchScalarGridSpec(
        num_scalar_prefetch=0,
        grid=(T,),
        in_specs=[
            # Per-step tiles (pipelined / double-buffered by Pallas).
            pl.BlockSpec((None, B, H), lambda t: (t, 0, 0)),
            pl.BlockSpec((None, B, N, K), lambda t: (t, 0, 0, 0)),
            # Step-invariant operands: constant block index -> fetched once,
            # resident in VMEM for the whole recurrence.
            pl.BlockSpec((H, P), lambda t: (0, 0)),
            pl.BlockSpec((1, P), lambda t: (0, 0)),
            pl.BlockSpec((B, N), lambda t: (0, 0)),
            pl.BlockSpec((S, N, N), lambda t: (0, 0, 0)),
        ],
        # Output stays resident across the grid; single HBM writeback at the end.
        out_specs=pl.BlockSpec((T, B, N), lambda t: (0, 0, 0)),
        scratch_shapes=[pltpu.VMEM((B, N), jnp.float32)],
    )

    return pl.pallas_call(
        kernel,
        out_shape=jax.ShapeDtypeStruct((T, B, N), jnp.float32),
        grid_spec=grid_spec,
        compiler_params=pltpu.CompilerParams(
            dimension_semantics=("arbitrary",)),   # sequential recurrence over T
    )(xs, memories, W_all, b_all, prev_weight, basis)


def head_forward(x, memory, prev_weight, W_all, b_all, shift_range=1):
    """Single-step forward matching the PyTorch module's forward()."""
    out = head_forward_seq(x[None], memory[None], prev_weight, W_all, b_all,
                           shift_range)
    return out[0]


# ------------------------- pure-JAX reference -------------------------------

def head_step_ref(x, memory, prev_weight, W_all, b_all, key_size, shift_range=1):
    K = key_size
    S = 2 * shift_range + 1
    eps = 1e-8
    lin = x @ W_all + b_all
    key = jax.nn.relu(lin[:, :K])
    beta = jax.nn.softplus(lin[:, K:K + 1])
    blending = jax.nn.sigmoid(lin[:, K + 1:K + 2])
    shift = jax.nn.softmax(lin[:, K + 2:K + 2 + S], axis=1)
    gamma = jax.nn.relu(lin[:, K + 2 + S:K + 3 + S]) + 1.0
    dot = jnp.einsum('bk,bnk->bn', key, memory)
    knorm = jnp.linalg.norm(key, axis=-1, keepdims=True)
    mnorm = jnp.linalg.norm(memory, axis=-1)
    cos = dot / (jnp.maximum(knorm, eps) * jnp.maximum(mnorm, eps))
    w = jax.nn.softmax(beta * cos, axis=1)
    w = blending * w + (1.0 - blending) * prev_weight
    N = w.shape[1]
    padded = jnp.concatenate([w[:, -1:], w, w[:, :1]], axis=1)
    w = sum(padded[:, k:k + N] * shift[:, k:k + 1] for k in range(S))
    w = w ** gamma
    return w / jnp.sum(w, axis=1, keepdims=True)


def head_forward_seq_ref(xs, memories, prev_weight, W_all, b_all, key_size,
                         shift_range=1):
    def step(w_prev, inp):
        x, mem = inp
        w = head_step_ref(x, mem, w_prev, W_all, b_all, key_size, shift_range)
        return w, w
    _, ws = jax.lax.scan(step, prev_weight, (xs, memories))
    return ws


# --------------------------------- demo --------------------------------------

if __name__ == "__main__":
    batch, hidden, key_size, weight_size, shift_range = 2, 32, 16, 8, 1
    T = 8
    S = 2 * shift_range + 1

    root = jax.random.PRNGKey(0)
    k1, k2, k3, k4, k5, kx, km, kw = jax.random.split(root, 8)

    def xavier_normal(k, fan_out, fan_in):
        std = (2.0 / (fan_in + fan_out)) ** 0.5
        return std * jax.random.normal(k, (fan_out, fan_in), jnp.float32)

    def xavier_uniform(k, fan_out, fan_in):
        bound = (6.0 / (fan_in + fan_out)) ** 0.5
        return jax.random.uniform(k, (fan_out, fan_in), jnp.float32, -bound, bound)

    # Deterministic parameters (shapes per the module's __init__; biases zero).
    W_key = xavier_normal(k1, key_size, hidden)
    W_beta = xavier_uniform(k2, 1, hidden)
    W_blend = xavier_uniform(k3, 1, hidden)
    W_shift = xavier_uniform(k4, S, hidden)
    W_gamma = xavier_normal(k5, 1, hidden)
    # (out,in) -> (in,out), concat along output axis: [key | beta | blend | shift | gamma]
    W_all = jnp.concatenate(
        [W_key.T, W_beta.T, W_blend.T, W_shift.T, W_gamma.T], axis=1)  # (H, K+3+S)
    b_all = jnp.zeros((1, key_size + 3 + S), jnp.float32)

    # Example inputs for a T-step recurrence.
    xs = jax.random.normal(kx, (T, batch, hidden), jnp.float32)
    memories = jax.random.normal(
        km, (T, batch, weight_size, key_size), jnp.float32)
    prev_weight = jax.nn.softmax(
        jax.random.normal(kw, (batch, weight_size), jnp.float32), axis=1)

    # Fused T-step recurrence in a single pallas_call.
    out_seq = jax.block_until_ready(
        head_forward_seq(xs, memories, prev_weight, W_all, b_all, shift_range))
    ref_seq = head_forward_seq_ref(xs, memories, prev_weight, W_all, b_all,
                                   key_size, shift_range)
    assert out_seq.shape == (T, batch, weight_size)
    # Tolerance covers the ~2^-12 relative error of the EUP approx reciprocal,
    # lightly compounded through the T-step recurrence.
    assert jnp.allclose(out_seq, ref_seq, rtol=5e-3, atol=1e-4), (
        float(jnp.max(jnp.abs(out_seq - ref_seq))))

    # Single step == the PyTorch module's forward().
    out1 = jax.block_until_ready(
        head_forward(xs[0], memories[0], prev_weight, W_all, b_all, shift_range))
    ref1 = head_step_ref(xs[0], memories[0], prev_weight, W_all, b_all,
                         key_size, shift_range)
    assert out1.shape == (batch, weight_size)
    assert jnp.allclose(out1, ref1, rtol=5e-3, atol=1e-4), (
        float(jnp.max(jnp.abs(out1 - ref1))))

    print("KERNEL_OK")
</pallas_src>

<mosaic_0001>
module attributes {stable_mosaic.version = 11 : i64} {
  func.func @kernel(%arg0: i32, %arg1: memref<1x2x32xf32, #tpu.memory_space<vmem>>, %arg2: memref<1x2x8x16xf32, #tpu.memory_space<vmem>>, %arg3: memref<32x22xf32, #tpu.memory_space<vmem>>, %arg4: memref<1x22xf32, #tpu.memory_space<vmem>>, %arg5: memref<2x8xf32, #tpu.memory_space<vmem>>, %arg6: memref<3x8x8xf32, #tpu.memory_space<vmem>>, %arg7: memref<8x2x8xf32, #tpu.memory_space<vmem>>, %arg8: memref<2x8xf32, #tpu.memory_space<vmem>>) attributes {dimension_semantics = [#tpu.dimension_semantics<arbitrary>], iteration_bounds = array<i64: 8>, scalar_prefetch = 0 : i64, scratch_operands = 1 : i64, tpu.core_type = #tpu.core_type<tc>, window_params = [{transform_indices = @transform_0, window_bounds = array<i64: 1, 2, 32>}, {transform_indices = @transform_1, window_bounds = array<i64: 1, 2, 8, 16>}, {pipeline_mode = #tpu.pipeline_mode<synchronous>, transform_indices = @transform_2, window_bounds = array<i64: 32, 22>}, {pipeline_mode = #tpu.pipeline_mode<synchronous>, transform_indices = @transform_3, window_bounds = array<i64: 1, 22>}, {pipeline_mode = #tpu.pipeline_mode<synchronous>, transform_indices = @transform_4, window_bounds = array<i64: 2, 8>}, {pipeline_mode = #tpu.pipeline_mode<synchronous>, transform_indices = @transform_5, window_bounds = array<i64: 3, 8, 8>}, {pipeline_mode = #tpu.pipeline_mode<synchronous>, transform_indices = @transform_6, window_bounds = array<i64: 8, 2, 8>}]} {
    %c0_i32 = arith.constant 0 : i32
    %0 = arith.cmpi eq, %arg0, %c0_i32 : i32
    %1 = arith.extui %0 : i1 to i32
    %c0_i32_0 = arith.constant 0 : i32
    %2 = arith.cmpi ne, %1, %c0_i32_0 : i32
    scf.if %2 {
      %c0_47 = arith.constant 0 : index
      %c0_48 = arith.constant 0 : index
      %123 = vector.load %arg5[%c0_47, %c0_48] : memref<2x8xf32, #tpu.memory_space<vmem>>, vector<2x8xf32>
      %c0_49 = arith.constant 0 : index
      %c0_50 = arith.constant 0 : index
      %124 = vector.load %arg8[%c0_49, %c0_50] : memref<2x8xf32, #tpu.memory_space<vmem>>, vector<2x8xf32>
      tpu.vector_store %arg8[%c0_49, %c0_50], %123 {strides = array<i32>} : memref<2x8xf32, #tpu.memory_space<vmem>>, vector<2x8xf32>,
    } else {
    }
    %c0 = arith.constant 0 : index
    %c0_1 = arith.constant 0 : index
    %c0_2 = arith.constant 0 : index
    %3 = vector.load %arg1[%c0, %c0_1, %c0_2] : memref<1x2x32xf32, #tpu.memory_space<vmem>>, vector<1x2x32xf32>
    %4 = vector.shape_cast %3 : vector<1x2x32xf32> to vector<2x32xf32>
    %c0_3 = arith.constant 0 : index
    %c0_4 = arith.constant 0 : index
    %5 = vector.load %arg3[%c0_3, %c0_4] : memref<32x22xf32, #tpu.memory_space<vmem>>, vector<32x22xf32>
    %c0_5 = arith.constant 0 : index
    %c0_6 = arith.constant 0 : index
    %6 = vector.load %arg4[%c0_5, %c0_6] : memref<1x22xf32, #tpu.memory_space<vmem>>, vector<1x22xf32>
    %cst = arith.constant dense<0.000000e+00> : vector<2x22xf32>
    %7 = tpu.matmul %4, %5, %cst {dimension_numbers = #tpu.dot_dimension_numbers<[1], [0], [0], [1], [0, 0, 1, 1], [], []>} : vector<2x32xf32>, vector<32x22xf32>, vector<2x22xf32> -> vector<2x22xf32>
    %8 = vector.broadcast %6 : vector<1x22xf32> to vector<2x22xf32>
    %9 = arith.addf %7, %8 : vector<2x22xf32>
    %10 = vector.extract_strided_slice %9 {offsets = [0, 0], sizes = [2, 16], strides = [1, 1]} : vector<2x22xf32> to vector<2x16xf32>
    %cst_7 = arith.constant 0.000000e+00 : f32
    %11 = vector.broadcast %cst_7 : f32 to vector<2x16xf32>
    %12 = arith.maximumf %10, %11 : vector<2x16xf32>
    %13 = vector.extract_strided_slice %9 {offsets = [0, 16], sizes = [2, 1], strides = [1, 1]} : vector<2x22xf32> to vector<2x1xf32>
    %cst_8 = arith.constant 0.000000e+00 : f32
    %14 = vector.broadcast %cst_8 : f32 to vector<2x1xf32>
    %15 = arith.maximumf %13, %14 : vector<2x1xf32>
    %16 = math.absf %13 : vector<2x1xf32>
    %cst_9 = arith.constant 0.000000e+00 : f32
    %17 = vector.broadcast %cst_9 : f32 to vector<2x1xf32>
    %18 = arith.subf %17, %16 : vector<2x1xf32>
    %19 = math.exp %18 : vector<2x1xf32>
    %20 = math.log1p %19 : vector<2x1xf32>
    %21 = arith.addf %15, %20 : vector<2x1xf32>
    %22 = vector.extract_strided_slice %9 {offsets = [0, 17], sizes = [2, 1], strides = [1, 1]} : vector<2x22xf32> to vector<2x1xf32>
    %cst_10 = arith.constant 0.000000e+00 : f32
    %23 = vector.broadcast %cst_10 : f32 to vector<2x1xf32>
    %24 = arith.subf %23, %22 : vector<2x1xf32>
    %25 = math.exp %24 : vector<2x1xf32>
    %cst_11 = arith.constant 1.000000e+00 : f32
    %26 = vector.broadcast %cst_11 : f32 to vector<2x1xf32>
    %27 = arith.addf %26, %25 : vector<2x1xf32>
    %cst_12 = arith.constant 1.000000e+00 : f32
    %28 = vector.broadcast %cst_12 : f32 to vector<2x1xf32>
    %29 = arith.divf %28, %27 : vector<2x1xf32>
    %30 = vector.extract_strided_slice %9 {offsets = [0, 18], sizes = [2, 3], strides = [1, 1]} : vector<2x22xf32> to vector<2x3xf32>
    %cst_13 = arith.constant dense<0xFF800000> : vector<2xf32>
    %31 = vector.multi_reduction <maximumf>, %30, %cst_13 [1] : vector<2x3xf32> to vector<2xf32>
    %32 = vector.shape_cast %31 : vector<2xf32> to vector<2x1xf32>
    %33 = vector.broadcast %32 : vector<2x1xf32> to vector<2x3xf32>
    %34 = arith.subf %30, %33 : vector<2x3xf32>
    %35 = math.exp %34 : vector<2x3xf32>
    %cst_14 = arith.constant dense<0.000000e+00> : vector<2xf32>
    %36 = vector.multi_reduction <add>, %35, %cst_14 [1] : vector<2x3xf32> to vector<2xf32>
    %37 = vector.shape_cast %36 : vector<2xf32> to vector<2x1xf32>
    %38 = tpu.reciprocal %37 {approx = true} : vector<2x1xf32> -> vector<2x1xf32>
    %39 = vector.broadcast %38 : vector<2x1xf32> to vector<2x3xf32>
    %40 = arith.mulf %35, %39 : vector<2x3xf32>
    %41 = vector.extract_strided_slice %9 {offsets = [0, 21], sizes = [2, 1], strides = [1, 1]} : vector<2x22xf32> to vector<2x1xf32>
    %cst_15 = arith.constant 0.000000e+00 : f32
    %42 = vector.broadcast %cst_15 : f32 to vector<2x1xf32>
    %43 = arith.maximumf %41, %42 : vector<2x1xf32>
    %cst_16 = arith.constant 1.000000e+00 : f32
    %44 = vector.broadcast %cst_16 : f32 to vector<2x1xf32>
    %45 = arith.addf %43, %44 : vector<2x1xf32>
    %c0_17 = arith.constant 0 : index
    %c0_18 = arith.constant 0 : index
    %c0_19 = arith.constant 0 : index
    %c0_20 = arith.constant 0 : index
    %46 = vector.load %arg2[%c0_17, %c0_18, %c0_19, %c0_20] : memref<1x2x8x16xf32, #tpu.memory_space<vmem>>, vector<1x2x8x16xf32>
    %47 = vector.shape_cast %46 : vector<1x2x8x16xf32> to vector<2x8x16xf32>
    %48 = vector.shape_cast %12 : vector<2x16xf32> to vector<2x1x16xf32>
    %49 = vector.broadcast %48 : vector<2x1x16xf32> to vector<2x8x16xf32>
    %50 = arith.mulf %49, %47 : vector<2x8x16xf32>
    %cst_21 = arith.constant dense<0.000000e+00> : vector<2x8xf32>
    %51 = vector.multi_reduction <add>, %50, %cst_21 [2] : vector<2x8x16xf32> to vector<2x8xf32>
    %52 = arith.mulf %12, %12 : vector<2x16xf32>
    %cst_22 = arith.constant dense<0.000000e+00> : vector<2xf32>
    %53 = vector.multi_reduction <add>, %52, %cst_22 [1] : vector<2x16xf32> to vector<2xf32>
    %54 = vector.shape_cast %53 : vector<2xf32> to vector<2x1xf32>
    %55 = math.sqrt %54 : vector<2x1xf32>
    %56 = arith.mulf %47, %47 : vector<2x8x16xf32>
    %cst_23 = arith.constant dense<0.000000e+00> : vector<2x8xf32>
    %57 = vector.multi_reduction <add>, %56, %cst_23 [2] : vector<2x8x16xf32> to vector<2x8xf32>
    %58 = math.sqrt %57 : vector<2x8xf32>
    %cst_24 = arith.constant 9.99999993E-9 : f32
    %59 = vector.broadcast %cst_24 : f32 to vector<2x1xf32>
    %60 = arith.maximumf %55, %59 : vector<2x1xf32>
    %cst_25 = arith.constant 9.99999993E-9 : f32
    %61 = vector.broadcast %cst_25 : f32 to vector<2x8xf32>
    %62 = arith.maximumf %58, %61 : vector<2x8xf32>
    %63 = vector.broadcast %60 : vector<2x1xf32> to vector<2x8xf32>
    %64 = arith.mulf %63, %62 : vector<2x8xf32>
    %65 = tpu.reciprocal %64 {approx = true} : vector<2x8xf32> -> vector<2x8xf32>
    %66 = arith.mulf %51, %65 : vector<2x8xf32>
    %67 = vector.broadcast %21 : vector<2x1xf32> to vector<2x8xf32>
    %68 = arith.mulf %67, %66 : vector<2x8xf32>
    %cst_26 = arith.constant dense<0xFF800000> : vector<2xf32>
    %69 = vector.multi_reduction <maximumf>, %68, %cst_26 [1] : vector<2x8xf32> to vector<2xf32>
    %70 = vector.shape_cast %69 : vector<2xf32> to vector<2x1xf32>
    %71 = vector.broadcast %70 : vector<2x1xf32> to vector<2x8xf32>
    %72 = arith.subf %68, %71 : vector<2x8xf32>
    %73 = math.exp %72 : vector<2x8xf32>
    %cst_27 = arith.constant dense<0.000000e+00> : vector<2xf32>
    %74 = vector.multi_reduction <add>, %73, %cst_27 [1] : vector<2x8xf32> to vector<2xf32>
    %75 = vector.shape_cast %74 : vector<2xf32> to vector<2x1xf32>
    %76 = tpu.reciprocal %75 {approx = true} : vector<2x1xf32> -> vector<2x1xf32>
    %77 = vector.broadcast %76 : vector<2x1xf32> to vector<2x8xf32>
    %78 = arith.mulf %73, %77 : vector<2x8xf32>
    %c0_28 = arith.constant 0 : index
    %c0_29 = arith.constant 0 : index
    %79 = vector.load %arg8[%c0_28, %c0_29] : memref<2x8xf32, #tpu.memory_space<vmem>>, vector<2x8xf32>
    %80 = vector.broadcast %29 : vector<2x1xf32> to vector<2x8xf32>
    %81 = arith.mulf %80, %78 : vector<2x8xf32>
    %cst_30 = arith.constant 1.000000e+00 : f32
    %82 = vector.broadcast %cst_30 : f32 to vector<2x1xf32>
    %83 = arith.subf %82, %29 : vector<2x1xf32>
    %84 = vector.broadcast %83 : vector<2x1xf32> to vector<2x8xf32>
    %85 = arith.mulf %84, %79 : vector<2x8xf32>
    %86 = arith.addf %81, %85 : vector<2x8xf32>
    %cst_31 = arith.constant 0.000000e+00 : f32
    %87 = vector.broadcast %cst_31 : f32 to vector<2x8xf32>
    %88 = vector.extract_strided_slice %40 {offsets = [0, 0], sizes = [2, 1], strides = [1, 1]} : vector<2x3xf32> to vector<2x1xf32>
    %c0_32 = arith.constant 0 : index
    %c0_33 = arith.constant 0 : index
    %c0_34 = arith.constant 0 : index
    %89 = vector.load %arg6[%c0_32, %c0_33, %c0_34] : memref<3x8x8xf32, #tpu.memory_space<vmem>>, vector<1x8x8xf32>
    %90 = vector.shape_cast %89 : vector<1x8x8xf32> to vector<8x8xf32>
    %cst_35 = arith.constant dense<0.000000e+00> : vector<2x8xf32>
    %91 = tpu.matmul %86, %90, %cst_35 {dimension_numbers = #tpu.dot_dimension_numbers<[1], [0], [0], [1], [0, 0, 1, 1], [], []>} : vector<2x8xf32>, vector<8x8xf32>, vector<2x8xf32> -> vector<2x8xf32>
    %92 = vector.broadcast %88 : vector<2x1xf32> to vector<2x8xf32>
    %93 = arith.mulf %92, %91 : vector<2x8xf32>
    %94 = arith.addf %87, %93 : vector<2x8xf32>
    %95 = vector.extract_strided_slice %40 {offsets = [0, 1], sizes = [2, 1], strides = [1, 1]} : vector<2x3xf32> to vector<2x1xf32>
    %c1 = arith.constant 1 : index
    %c0_36 = arith.constant 0 : index
    %c0_37 = arith.constant 0 : index
    %96 = vector.load %arg6[%c1, %c0_36, %c0_37] : memref<3x8x8xf32, #tpu.memory_space<vmem>>, vector<1x8x8xf32>
    %97 = vector.shape_cast %96 : vector<1x8x8xf32> to vector<8x8xf32>
    %cst_38 = arith.constant dense<0.000000e+00> : vector<2x8xf32>
    %98 = tpu.matmul %86, %97, %cst_38 {dimension_numbers = #tpu.dot_dimension_numbers<[1], [0], [0], [1], [0, 0, 1, 1], [], []>} : vector<2x8xf32>, vector<8x8xf32>, vector<2x8xf32> -> vector<2x8xf32>
    %99 = vector.broadcast %95 : vector<2x1xf32> to vector<2x8xf32>
    %100 = arith.mulf %99, %98 : vector<2x8xf32>
    %101 = arith.addf %94, %100 : vector<2x8xf32>
    %102 = vector.extract_strided_slice %40 {offsets = [0, 2], sizes = [2, 1], strides = [1, 1]} : vector<2x3xf32> to vector<2x1xf32>
    %c2 = arith.constant 2 : index
    %c0_39 = arith.constant 0 : index
    %c0_40 = arith.constant 0 : index
    %103 = vector.load %arg6[%c2, %c0_39, %c0_40] : memref<3x8x8xf32, #tpu.memory_space<vmem>>, vector<1x8x8xf32>
    %104 = vector.shape_cast %103 : vector<1x8x8xf32> to vector<8x8xf32>
    %cst_41 = arith.constant dense<0.000000e+00> : vector<2x8xf32>
    %105 = tpu.matmul %86, %104, %cst_41 {dimension_numbers = #tpu.dot_dimension_numbers<[1], [0], [0], [1], [0, 0, 1, 1], [], []>} : vector<2x8xf32>, vector<8x8xf32>, vector<2x8xf32> -> vector<2x8xf32>
    %106 = vector.broadcast %102 : vector<2x1xf32> to vector<2x8xf32>
    %107 = arith.mulf %106, %105 : vector<2x8xf32>
    %108 = arith.addf %101, %107 : vector<2x8xf32>
    %109 = math.log %108 : vector<2x8xf32>
    %110 = vector.broadcast %45 : vector<2x1xf32> to vector<2x8xf32>
    %111 = arith.mulf %110, %109 : vector<2x8xf32>
    %112 = math.exp %111 : vector<2x8xf32>
    %cst_42 = arith.constant dense<0.000000e+00> : vector<2xf32>
    %113 = vector.multi_reduction <add>, %112, %cst_42 [1] : vector<2x8xf32> to vector<2xf32>
    %114 = vector.shape_cast %113 : vector<2xf32> to vector<2x1xf32>
    %115 = tpu.reciprocal %114 {approx = true} : vector<2x1xf32> -> vector<2x1xf32>
    %116 = vector.broadcast %115 : vector<2x1xf32> to vector<2x8xf32>
    %117 = arith.mulf %112, %116 : vector<2x8xf32>
    %c0_43 = arith.constant 0 : index
    %c0_44 = arith.constant 0 : index
    %118 = vector.load %arg8[%c0_43, %c0_44] : memref<2x8xf32, #tpu.memory_space<vmem>>, vector<2x8xf32>
    tpu.vector_store %arg8[%c0_43, %c0_44], %117 {strides = array<i32>} : memref<2x8xf32, #tpu.memory_space<vmem>>, vector<2x8xf32>,
    %119 = arith.index_cast %arg0 : i32 to index
    %c0_45 = arith.constant 0 : index
    %c0_46 = arith.constant 0 : index
    %120 = vector.load %arg7[%119, %c0_45, %c0_46] : memref<8x2x8xf32, #tpu.memory_space<vmem>>, vector<1x2x8xf32>
    %121 = vector.shape_cast %120 : vector<1x2x8xf32> to vector<2x8xf32>
    %122 = vector.shape_cast %117 : vector<2x8xf32> to vector<1x2x8xf32>
    tpu.vector_store %arg7[%119, %c0_45, %c0_46], %122 {strides = array<i32>} : memref<8x2x8xf32, #tpu.memory_space<vmem>>, vector<1x2x8xf32>,
    return
  }
  func.func @transform_0(%arg0: i32) -> (i32, i32, i32) {
    %c0_i32 = arith.constant 0 : i32
    %c0_i32_0 = arith.constant 0 : i32
    %c0_i32_1 = arith.constant 0 : i32
    return %arg0, %c0_i32, %c0_i32_0 : i32, i32, i32
  }
  func.func @transform_1(%arg0: i32) -> (i32, i32, i32, i32) {
    %c0_i32 = arith.constant 0 : i32
    %c0_i32_0 = arith.constant 0 : i32
    %c0_i32_1 = arith.constant 0 : i32
    %c0_i32_2 = arith.constant 0 : i32
    return %arg0, %c0_i32, %c0_i32_0, %c0_i32_1 : i32, i32, i32, i32
  }
  func.func @transform_2(%arg0: i32) -> (i32, i32) {
    %c0_i32 = arith.constant 0 : i32
    %c0_i32_0 = arith.constant 0 : i32
    %c0_i32_1 = arith.constant 0 : i32
    return %c0_i32, %c0_i32_0 : i32, i32
  }
  func.func @transform_3(%arg0: i32) -> (i32, i32) {
    %c0_i32 = arith.constant 0 : i32
    %c0_i32_0 = arith.constant 0 : i32
    %c0_i32_1 = arith.constant 0 : i32
    return %c0_i32, %c0_i32_0 : i32, i32
  }
  func.func @transform_4(%arg0: i32) -> (i32, i32) {
    %c0_i32 = arith.constant 0 : i32
    %c0_i32_0 = arith.constant 0 : i32
    %c0_i32_1 = arith.constant 0 : i32
    return %c0_i32, %c0_i32_0 : i32, i32
  }
  func.func @transform_5(%arg0: i32) -> (i32, i32, i32) {
    %c0_i32 = arith.constant 0 : i32
    %c0_i32_0 = arith.constant 0 : i32
    %c0_i32_1 = arith.constant 0 : i32
    %c0_i32_2 = arith.constant 0 : i32
    return %c0_i32, %c0_i32_0, %c0_i32_1 : i32, i32, i32
  }
  func.func @transform_6(%arg0: i32) -> (i32, i32, i32) {
    %c0_i32 = arith.constant 0 : i32
    %c0_i32_0 = arith.constant 0 : i32
    %c0_i32_1 = arith.constant 0 : i32
    %c0_i32_2 = arith.constant 0 : i32
    return %c0_i32, %c0_i32_0, %c0_i32_1 : i32, i32, i32
  }
}

</mosaic_0001>

<llo_original>
// kernel: tpu_custom_call.1
$region0: #{tpu_custom_call.1}
  #allocation0 [shape = 'u32[]', space=smem, size = 0x4, offset = 0x4, fixed_abs, tag = 'smem constant byte address 0x4 - core index']
  #allocation1 [shape = 'u32[72,128]{1,0:T(1,128)}', space=vmem, size = 0x9000, scoped, tag = 'internal scratch']
  #allocation2 [shape = 'f32[2,8]{1,0:T(2,128)}', space=vmem, size = 0x400, scoped, tag = 'scratch operand']
  %s0 = inlined_call_operand.vmem [shape: f32[8,2,32], index: 0, kind: input, shape index: {}]
  %s1 = inlined_call_operand.hbm [shape: f32[8,2,8,16], index: 1, kind: input, shape index: {}]
  %s2 = inlined_call_operand.vmem [shape: f32[32,22], index: 2, kind: input, shape index: {}]
  %s3 = inlined_call_operand.vmem [shape: f32[1,22], index: 3, kind: input, shape index: {}]
  %s4 = inlined_call_operand.vmem [shape: f32[2,8], index: 4, kind: input, shape index: {}]
  %s5 = inlined_call_operand.vmem [shape: f32[3,8,8], index: 5, kind: input, shape index: {}]
  %s6 = inlined_call_operand.hbm [shape: f32[8,2,8], index: 6, kind: output, shape index: {}]
  %s7 = sld [smem:[#allocation0]]
  $region65: #{tpu_custom_call.1} parent=0
    _
  %s9 = ssub.s32 1, %s7
  %s10 = scalar_select 0, %s9, %s7
  $region1: #{tpu_custom_call.1} parent=0
    #allocation3 [shape = 'u8[16384]{0}', space=vmem, size = 0x4000, scoped, tag = 'input window, operand 1']
    #allocation4 [shape = 's32[2]{0}', space=sflag, size = 0x8, scoped, tag = 'scoped memory for tpu_custom_call.1']
    #allocation5 [shape = 's32[2]{0}', space=sflag, size = 0x8, scoped, tag = 'scoped memory for tpu_custom_call.1']
    #allocation6 [shape = 'u8[8192]{0}', space=vmem, size = 0x2000, scoped, tag = 'output window, operand 0, single buffered']
    %11 = vsyncpa [#allocation4], 0
    %s12 = scalar_lea.sflag [#allocation4], 1
    %13 = vsyncpa %s12, 0
    %14 = vsyncpa [#allocation5], 0
    loop: start=0, step=1, limit=10
    $region2: #{tpu_custom_call.1} parent=1 // loop_pre_header
      _
    $region3: #{tpu_custom_call.1} parent=1 // loop_header
      %s16 = sphi 0, %s20
      %p17 = scmp.ge.s32.totalorder %s16, 10
      %s26 = sphi 0, %s28
      %s29 = sphi 0, %s26
      %s30 = sphi 0, %s29
      %s46 = sphi 0, %s30
      %s52 = sphi 0, %s54
      %s55 = sphi 0, %s52
      %s56 = sphi 0, %s55
      %s72 = sphi 0, %s56
      %s76 = sphi 0, %s76
      %s78 = sphi 0, %s76
      %s79 = sphi 0, %s78
      %s93 = sphi 0, %s79
      %s97 = sphi 0, %s97
      %s99 = sphi 0, %s97
      %s100 = sphi 0, %s99
      %s114 = sphi 0, %s100
      %s118 = sphi 0, %s118
      %s120 = sphi 0, %s118
      %s121 = sphi 0, %s120
      %s135 = sphi 0, %s121
      %s139 = sphi 0, %s139
      %s141 = sphi 0, %s139
      %s142 = sphi 0, %s141
      %s156 = sphi 0, %s142
      %s160 = sphi 0, %s160
      %s162 = sphi 0, %s160
      %s163 = sphi 0, %s162
      %s177 = sphi 0, %s163
    $region4: #{tpu_custom_call.1} parent=1 // loop_header_branch
      %19 = sbr.rel (%p17) target = $region8
    $region5: #{tpu_custom_call.1} parent=1 // loop_body
      %s21 = ssub.s32 %s16, 1
      %s22 = ssub.s32 %s16, 2
      %s23 = sadd.s32 %s16, 1
      %s24 = ssub.s32 %s16, %s23
      %p25 = scmp.eq.s32.totalorder %s24, 0
      %s27 = sadd.s32 %s26, 1
      %s28 = scalar_select %p25, %s26, %s27
      %p31 = pneg %p25
      %p32 = scmp.eq.s32.totalorder %s16, 7
      %p33 = por %p31, %p32
      %p34 = scmp.ne.s32.totalorder %s26, %s29
      %p35 = scmp.eq.s32.totalorder %s16, 0
      %p36 = por %p34, %p35
      %p37 = scmp.ne.s32.totalorder %s26, %s29
      %p38 = scmp.eq.s32.totalorder %s21, 7
      %p39 = por %p37, %p38
      %p40 = scmp.ne.s32.totalorder %s29, %s30
      %p41 = scmp.eq.s32.totalorder %s21, 0
      %p42 = por %p40, %p41
      %p43 = scmp.ne.s32.totalorder %s29, %s30
      %p44 = scmp.eq.s32.totalorder %s22, 7
      %p45 = por %p43, %p44
      %p47 = scmp.ne.s32.totalorder %s30, %s46
      %p48 = scmp.eq.s32.totalorder %s22, 0
      %p49 = por %p47, %p48
      %s50 = ssub.s32 %s16, %s23
      %p51 = scmp.eq.s32.totalorder %s50, 0
      %s53 = sadd.s32 %s52, 1
      %s54 = scalar_select %p51, %s52, %s53
      %p57 = pneg %p51
      %p58 = scmp.eq.s32.totalorder %s16, 7
      %p59 = por %p57, %p58
      %p60 = scmp.ne.s32.totalorder %s52, %s55
      %p61 = scmp.eq.s32.totalorder %s16, 0
      %p62 = por %p60, %p61
      %p63 = scmp.ne.s32.totalorder %s52, %s55
      %p64 = scmp.eq.s32.totalorder %s21, 7
      %p65 = por %p63, %p64
      %p66 = scmp.ne.s32.totalorder %s55, %s56
      %p67 = scmp.eq.s32.totalorder %s21, 0
      %p68 = por %p66, %p67
      %p69 = scmp.ne.s32.totalorder %s55, %s56
      %p70 = scmp.eq.s32.totalorder %s22, 7
      %p71 = por %p69, %p70
      %p73 = scmp.ne.s32.totalorder %s56, %s72
      %p74 = scmp.eq.s32.totalorder %s22, 0
      %p75 = por %p73, %p74
      %s77 = sadd.s32 %s76, 1
      %p80 = scmp.eq.s32.totalorder %s16, 7
      %p81 = scmp.ne.s32.totalorder %s76, %s78
      %p82 = scmp.eq.s32.totalorder %s16, 0
      %p83 = por %p81, %p82
      %p84 = scmp.ne.s32.totalorder %s76, %s78
      %p85 = scmp.eq.s32.totalorder %s21, 7
      %p86 = por %p84, %p85
      %p87 = scmp.ne.s32.totalorder %s78, %s79
      %p88 = scmp.eq.s32.totalorder %s21, 0
      %p89 = por %p87, %p88
      %p90 = scmp.ne.s32.totalorder %s78, %s79
      %p91 = scmp.eq.s32.totalorder %s22, 7
      %p92 = por %p90, %p91
      %p94 = scmp.ne.s32.totalorder %s79, %s93
      %p95 = scmp.eq.s32.totalorder %s22, 0
      %p96 = por %p94, %p95
      %s98 = sadd.s32 %s97, 1
      %p101 = scmp.eq.s32.totalorder %s16, 7
      %p102 = scmp.ne.s32.totalorder %s97, %s99
      %p103 = scmp.eq.s32.totalorder %s16, 0
      %p104 = por %p102, %p103
      %p105 = scmp.ne.s32.totalorder %s97, %s99
      %p106 = scmp.eq.s32.totalorder %s21, 7
      %p107 = por %p105, %p106
      %p108 = scmp.ne.s32.totalorder %s99, %s100
      %p109 = scmp.eq.s32.totalorder %s21, 0
      %p110 = por %p108, %p109
      %p111 = scmp.ne.s32.totalorder %s99, %s100
      %p112 = scmp.eq.s32.totalorder %s22, 7
      %p113 = por %p111, %p112
      %p115 = scmp.ne.s32.totalorder %s100, %s114
      %p116 = scmp.eq.s32.totalorder %s22, 0
      %p117 = por %p115, %p116
      %s119 = sadd.s32 %s118, 1
      %p122 = scmp.eq.s32.totalorder %s16, 7
      %p123 = scmp.ne.s32.totalorder %s118, %s120
      %p124 = scmp.eq.s32.totalorder %s16, 0
      %p125 = por %p123, %p124
      %p126 = scmp.ne.s32.totalorder %s118, %s120
      %p127 = scmp.eq.s32.totalorder %s21, 7
      %p128 = por %p126, %p127
      %p129 = scmp.ne.s32.totalorder %s120, %s121
      %p130 = scmp.eq.s32.totalorder %s21, 0
      %p131 = por %p129, %p130
      %p132 = scmp.ne.s32.totalorder %s120, %s121
      %p133 = scmp.eq.s32.totalorder %s22, 7
      %p134 = por %p132, %p133
      %p136 = scmp.ne.s32.totalorder %s121, %s135
      %p137 = scmp.eq.s32.totalorder %s22, 0
      %p138 = por %p136, %p137
      %s140 = sadd.s32 %s139, 1
      %p143 = scmp.eq.s32.totalorder %s16, 7
      %p144 = scmp.ne.s32.totalorder %s139, %s141
      %p145 = scmp.eq.s32.totalorder %s16, 0
      %p146 = por %p144, %p145
      %p147 = scmp.ne.s32.totalorder %s139, %s141
      %p148 = scmp.eq.s32.totalorder %s21, 7
      %p149 = por %p147, %p148
      %p150 = scmp.ne.s32.totalorder %s141, %s142
      %p151 = scmp.eq.s32.totalorder %s21, 0
      %p152 = por %p150, %p151
      %p153 = scmp.ne.s32.totalorder %s141, %s142
      %p154 = scmp.eq.s32.totalorder %s22, 7
      %p155 = por %p153, %p154
      %p157 = scmp.ne.s32.totalorder %s142, %s156
      %p158 = scmp.eq.s32.totalorder %s22, 0
      %p159 = por %p157, %p158
      %s161 = sadd.s32 %s160, 1
      %p164 = scmp.eq.s32.totalorder %s16, 7
      %p165 = scmp.ne.s32.totalorder %s160, %s162
      %p166 = scmp.eq.s32.totalorder %s16, 0
      %p167 = por %p165, %p166
      %p168 = scmp.ne.s32.totalorder %s160, %s162
      %p169 = scmp.eq.s32.totalorder %s21, 7
      %p170 = por %p168, %p169
      %p171 = scmp.ne.s32.totalorder %s162, %s163
      %p172 = scmp.eq.s32.totalorder %s21, 0
      %p173 = por %p171, %p172
      %p174 = scmp.ne.s32.totalorder %s162, %s163
      %p175 = scmp.eq.s32.totalorder %s22, 7
      %p176 = por %p174, %p175
      %p178 = scmp.ne.s32.totalorder %s163, %s177
      %p179 = scmp.eq.s32.totalorder %s22, 0
      %p180 = por %p178, %p179
      %p181 = scmp.le.s32.totalorder 1, %s16
      %p182 = scmp.lt.s32.totalorder %s16, 9
      %p183 = pnand %p181, %p182
      %p184 = pneg %p183
      // Predicated region
      $region9: #{tpu_custom_call.1} parent=5 // pred_check
        _
      $region10: #{tpu_custom_call.1} parent=5 // pred_check_branch
        %186 = sbr.rel (%p183) target = $region12
      $region11: #{tpu_custom_call.1} parent=5 // pred_region
        %s187 = ssub.s32 %s16, 1
        // Predicated region
        $region13: #{tpu_custom_call.1} parent=11 // pred_check
          %p188 = pneg %p89
        $region14: #{tpu_custom_call.1} parent=11 // pred_check_branch
          %190 = sbr.rel (%p188) target = $region16
        $region15: #{tpu_custom_call.1} parent=11 // pred_region
          _
        $region16: #{tpu_custom_call.1} parent=11 // pred_fallthru
          _
        // Predicated region
        $region17: #{tpu_custom_call.1} parent=11 // pred_check
          %p191 = pneg %p110
        $region18: #{tpu_custom_call.1} parent=11 // pred_check_branch
          %193 = sbr.rel (%p191) target = $region20
        $region19: #{tpu_custom_call.1} parent=11 // pred_region
          _
        $region20: #{tpu_custom_call.1} parent=11 // pred_fallthru
          _
        // Predicated region
        $region21: #{tpu_custom_call.1} parent=11 // pred_check
          %p194 = pneg %p131
        $region22: #{tpu_custom_call.1} parent=11 // pred_check_branch
          %196 = sbr.rel (%p194) target = $region24
        $region23: #{tpu_custom_call.1} parent=11 // pred_region
          _
        $region24: #{tpu_custom_call.1} parent=11 // pred_fallthru
          _
        // Predicated region
        $region25: #{tpu_custom_call.1} parent=11 // pred_check
          %p197 = pneg %p152
        $region26: #{tpu_custom_call.1} parent=11 // pred_check_branch
          %199 = sbr.rel (%p197) target = $region28
        $region27: #{tpu_custom_call.1} parent=11 // pred_region
          _
        $region28: #{tpu_custom_call.1} parent=11 // pred_fallthru
          _
      $region12: #{tpu_custom_call.1} parent=5 // pred_fallthru
        _
      %p200 = scmp.lt.s32.totalorder %s16, 8
      // Predicated region
      $region29: #{tpu_custom_call.1} parent=5 // pred_check
        %p201 = pneg %p200
      $region30: #{tpu_custom_call.1} parent=5 // pred_check_branch
        %203 = sbr.rel (%p201) target = $region32
      $region31: #{tpu_custom_call.1} parent=5 // pred_region
        // Predicated region
        $region33: #{tpu_custom_call.1} parent=31 // pred_check
          %p204 = pneg %p36
        $region34: #{tpu_custom_call.1} parent=31 // pred_check_branch
          %206 = sbr.rel (%p204) target = $region36
        $region35: #{tpu_custom_call.1} parent=31 // pred_region
          %p207 = scmp.lt.s32.totalorder %s16, 7
          %s208 = scalar_select %p207, %s16, 7
          %s209 = smul.addr %s208, 2
          %s210 = scalar_lea.vmem %s0, %s209
        $region36: #{tpu_custom_call.1} parent=31 // pred_fallthru
          _
        // Predicated region
        $region37: #{tpu_custom_call.1} parent=31 // pred_check
          %p211 = pneg %p62
        $region38: #{tpu_custom_call.1} parent=31 // pred_check_branch
          %213 = sbr.rel (%p211) target = $region40
        $region39: #{tpu_custom_call.1} parent=31 // pred_region
          %s214 = sand.u32 %s52, 1
          %s215 = scalar_lea.sflag [#allocation4], %s214
          %s216 = sand.u32 %s52, 1
          %s217 = smul.addr %s216, 16
          %s218 = scalar_lea.vmem [#allocation3], %s217
          %220 = vsyncadd %s215, 0
          %s221 = smul.addr %s16, 2
          %s222 = smul.addr %s221, 8
          %s223 = scalar_lea.hbm %s1, %s222
          %s224 = sshll.u32 %s223, 4
          %s225 = int_to_ptr.hbm [resolvable:$true] %s224
          %s226 = sshll.u32 %s218, 4
          %s227 = int_to_ptr.vmem [resolvable:$true] %s226
          %232 = dma.hbm_to_vmem [thread:$0]  %s225, 256, %s227, %s215, 128, 128, 8
        $region40: #{tpu_custom_call.1} parent=31 // pred_fallthru
          _
      $region32: #{tpu_custom_call.1} parent=5 // pred_fallthru
        _
      %p233 = scmp.le.s32.totalorder 1, %s16
      %p234 = scmp.lt.s32.totalorder %s16, 9
      %p235 = pnand %p233, %p234
      %p236 = pneg %p235
      // Predicated region
      $region41: #{tpu_custom_call.1} parent=5 // pred_check
        _
      $region42: #{tpu_custom_call.1} parent=5 // pred_check_branch
        %238 = sbr.rel (%p235) target = $region44
      $region43: #{tpu_custom_call.1} parent=5 // pred_region
        %s239 = ssub.s32 %s16, 1
        %s240 = sand.u32 %s55, 1
        %s241 = scalar_lea.sflag [#allocation4], %s240
        %s242 = sand.u32 %s55, 1
        %s243 = smul.addr %s242, 16
        %s244 = scalar_lea.vmem [#allocation3], %s243
        // Predicated region
        $region45: #{tpu_custom_call.1} parent=43 // pred_check
          %p245 = pneg %p68
        $region46: #{tpu_custom_call.1} parent=43 // pred_check_branch
          %247 = sbr.rel (%p245) target = $region48
        $region47: #{tpu_custom_call.1} parent=43 // pred_region
          %249 = dma.done %s241, 256
        $region48: #{tpu_custom_call.1} parent=43 // pred_fallthru
          _
        %p250 = scmp.lt.s32.totalorder %s21, 7
        %s251 = scalar_select %p250, %s21, 7
        %s252 = smul.addr %s251, 2
        %s253 = scalar_lea.vmem %s0, %s252
        %p254 = pneg %p42
        %p255 = pneg %p39
        %s256 = sand.u32 %s55, 1
        %s257 = scalar_lea.sflag [#allocation4], %s256
        %s258 = sand.u32 %s55, 1
        %s259 = smul.addr %s258, 16
        %s260 = scalar_lea.vmem [#allocation3], %s259
        %p261 = pneg %p68
        %p262 = pneg %p65
        %p263 = pneg %p89
        %p264 = pneg %p86
        %p265 = pneg %p110
        %p266 = pneg %p107
        %p267 = pneg %p131
        %p268 = pneg %p128
        %p269 = pneg %p152
        %p270 = pneg %p149
        %p271 = pneg %p173
        %p272 = pneg %p170
        %p273 = scmp.lt.s32.totalorder %s21, 7
        %s274 = scalar_select %p273, %s21, 7
        %s275 = smul.addr %s274, 2
        %s276 = scalar_lea.vmem %s0, %s275
        %p277 = scmp.eq.s32.totalorder %s21, 0
        // Predicated region
        $region49: #{tpu_custom_call.1} parent=43 // pred_check
          %p278 = pneg %p277
        $region50: #{tpu_custom_call.1} parent=43 // pred_check_branch
          %280 = sbr.rel (%p278) target = $region52
        $region51: #{tpu_custom_call.1} parent=43 // pred_region
          %v281 = vld [vmem:[%s4] sm:$0x3]
          %vm282 = vcmask 58368
          %283 = vst.msk [vmem:[#allocation2] sm:$0x3] %vm282, %v281
        $region52: #{tpu_custom_call.1} parent=43 // pred_fallthru
          _
        %v284 = vld [vmem:[%s276] sm:$0x3]
        %v285 = vld [vmem:[%s2] sm:$0xff]
        %v286 = vld [vmem:[%s2 + $0x8] sm:$0xff]
        %v287 = vld [vmem:[%s2 + $0x10] sm:$0xff]
        %v288 = vld [vmem:[%s2 + $0x18] sm:$0xff]
        %v289 = vld [vmem:[%s3] sm:$0x1]
        %v291 = vperm.slane %v289, 0
        %vm293 = vcmask 261120
        %v295 = vsel %vm293, %v284, 0
        %297 = vmatpush.msra.mxu0 0.0
        %298 = vmatpush.msra.mxu0 0.0
        %299 = vmatpush.msra.mxu0 0.0
        %300 = vmatpush.msra.mxu0 0.0
        %301 = vmatpush.msra.mxu0 0.0
        %302 = vmatpush.msra.mxu0 0.0
        %303 = vmatpush.msra.mxu0 0.0
        %304 = vmatpush.msra.mxu0 0.0
        %305 = vmatpush.msra.mxu0 0.0
        %306 = vmatpush.msra.mxu0 0.0
        %307 = vmatpush.msra.mxu0 0.0
        %308 = vmatpush.msra.mxu0 0.0
        %309 = vmatpush.msra.mxu0 %v288
        %310 = vmatpush.msra.mxu0 %v287
        %311 = vmatpush.msra.mxu0 %v286
        %312 = vmatpush.msra.mxu0 %v285
        %313 = vmatmul.f32.gmra.mxu0 %v295
        %v314 = vpop.f32.mrf.mxu0
        %v315 = vadd.f32 %v291, %v314
        %316 = vdwg.mxu0
        %v317 = vmax.f32 %v315, 0.0
        %v318 = vand.u32 2147483647, %v315
        %v319 = vsub.f32 0.0, %v318
        %v320 = vmul.f32 %v319, 1.442695
        %v321 = vpow.pop %v320
        %v322 = vadd.f32 %v321, 1.0
        %v323 = vlog2.pop %v322
        %v324 = vmul.f32 %v323, 0.6931472
        %v325 = vmul.f32 -0.5, %v321
        %v326 = vadd.f32 %v325, 1.0
        %v327 = vmul.f32 %v326, %v321
        %v328 = vand.u32 2147483647, %v321
        %vm329 = vcmp.lt.f32.partialorder %v328, 0.0004427343
        %v330 = vsel %vm329, %v327, %v324
        %v331 = vadd.f32 %v317, %v330
        %v332 = vsub.f32 0.0, %v315
        %v333 = vmul.f32 %v332, 1.442695
        %v334 = vpow.pop %v333
        %v335 = vadd.f32 %v334, 1.0
        %v336 = vrcp.pop %v335
        %v337 = vmul.f32 %v335, %v336
        %v338 = vsub.f32 1.0, %v337
        %v339 = vmul.f32 %v336, %v338
        %v340 = vadd.f32 %v336, %v339
        %vm341 = vweird.f32 %v335
        %vm342 = vweird.f32 %v336
        %vm343 = vmor %vm341, %vm342
        %v344 = vsel %vm343, %v336, %v340
        %v345 = vand.u32 2147483647, %v335
        %vm346 = vcmp.eq.f32.partialorder %v345, 8.507059e+37
        %v347 = vand.u32 %v335, 2147483648
        %v348 = vor.u32 1.1754944e-38, %v347
        %v349 = vsel %vm346, %v348, %v344
        %v350 = vmul.f32 1.0, %v349
        %vm351 = vcmask 165008
        %v352 = vsel %vm351, %v315, -inf
        %353 = vmax.xlane.f32.xlu0 %v352
        %v354 = vpop.xlane.xlu0 %353
        %v355 = vsub.f32 %v315, %v354
        %v356 = vmul.f32 %v355, 1.442695
        %v357 = vpow.pop %v356
        %359 = vrot.lane.b32.xlu0 %v357, 110
        %v360 = vpop.permute.xlu0 %359
        %vm362 = vcmask 17408
        %v363 = vsel %vm362, %v360, 0.0
        %364 = vadd.xlane.f32.xlu0 %v363
        %v365 = vpop.xlane.xlu0 %364
        %v366 = vrcp.pop %v365
        %v367 = vmul.f32 %v357, %v366
        %v368 = vadd.f32 %v317, 1.0
        %v369 = vld [vmem:[%s244] sm:$0xff]
        %v370 = vld [vmem:[%s244 + $0x8] sm:$0xff]
        %v372 = vrot.slane %v317, 1
        %v373 = vperm.slane %v317, 0
        %v374 = vperm.slane %v372, 0
        %v377 = vmul.f32 %v373, %v369
        %v378 = vmul.f32 %v374, %v370
        %vm379 = vcmask 130048
        %v380 = vsel %vm379, %v377, 0.0
        %381 = vadd.xlane.f32.xlu0 %v380
        %v382 = vpop.xlane.xlu0 %381
        %v383 = vsel %vm379, %v378, 0.0
        %384 = vadd.xlane.f32.xlu0 %v383
        %v385 = vpop.xlane.xlu0 %384
        %v386 = vmul.f32 %v317, %v317
        %vm387 = vcmask 123904
        %v388 = vsel %vm387, %v386, 0.0
        %389 = vadd.xlane.f32.xlu0 %v388
        %v390 = vpop.xlane.xlu0 %389
        %v391 = vrsqrt.pop %v390
        %v392 = vmul.f32 %v391, %v390
        %v393 = vmul.f32 %v392, %v391
        %v394 = vmul.f32 0.5, %v393
        %v395 = vsub.f32 1.5, %v394
        %v396 = vmul.f32 %v391, %v395
        %v397 = vmul.f32 %v390, %v396
        %vm398 = vcmp.eq.f32.partialorder %v390, inf
        %v399 = vsel %vm398, %v390, %v397
        %vm400 = vcmp.eq.f32.partialorder %v390, 0.0
        %v401 = vand.u32 %v390, 2147483648
        %v402 = vsel %vm400, %v401, %v399
        %v403 = vmul.f32 %v369, %v369
        %v404 = vmul.f32 %v370, %v370
        %v405 = vsel %vm379, %v403, 0.0
        %406 = vadd.xlane.f32.xlu0 %v405
        %v407 = vpop.xlane.xlu0 %406
        %v408 = vsel %vm379, %v404, 0.0
        %409 = vadd.xlane.f32.xlu0 %v408
        %v410 = vpop.xlane.xlu0 %409
        %v411 = vrsqrt.pop %v407
        %v412 = vmul.f32 %v411, %v407
        %v413 = vmul.f32 %v412, %v411
        %v414 = vmul.f32 0.5, %v413
        %v415 = vsub.f32 1.5, %v414
        %v416 = vmul.f32 %v411, %v415
        %v417 = vmul.f32 %v407, %v416
        %vm418 = vcmp.eq.f32.partialorder %v407, inf
        %v419 = vsel %vm418, %v407, %v417
        %vm420 = vcmp.eq.f32.partialorder %v407, 0.0
        %v421 = vand.u32 %v407, 2147483648
        %v422 = vsel %vm420, %v421, %v419
        %v423 = vrsqrt.pop %v410
        %v424 = vmul.f32 %v423, %v410
        %v425 = vmul.f32 %v424, %v423
        %v426 = vmul.f32 0.5, %v425
        %v427 = vsub.f32 1.5, %v426
        %v428 = vmul.f32 %v423, %v427
        %v429 = vmul.f32 %v410, %v428
        %vm430 = vcmp.eq.f32.partialorder %v410, inf
        %v431 = vsel %vm430, %v410, %v429
        %vm432 = vcmp.eq.f32.partialorder %v410, 0.0
        %v433 = vand.u32 %v410, 2147483648
        %v434 = vsel %vm432, %v433, %v431
        %v435 = vmax.f32 %v402, 1e-08
        %v436 = vmax.f32 %v422, 1e-08
        %v437 = vmax.f32 %v434, 1e-08
        %v440 = vlaneseq
        %v441 = vand.u32 %v440, 127
        %v442 = vperm.slane %v436, %v441
        %v443 = vperm.slane %v437, %v441
        %vm444 = vcmask 1041409
        %v445 = vsel %vm444, %v443, %v442
        %v447 = vmul.f32 %v435, %v445
        %v448 = vrcp.pop %v447
        %v450 = vperm.slane %v448, 0
        %v451 = vlaneseq
        %v452 = vshrl.u32 %v451, 7
        %454 = vset.pattern.permute.xlu0 %v452
        %455 = vperm.xlu0 %454, %v450
        %v456 = vpop.permute.xlu0 %455
        %v457 = vperm.slane %v448, 1
        %v458 = vlaneseq
        %v459 = vshrl.u32 %v458, 7
        %461 = vset.pattern.permute.xlu0 %v459
        %462 = vperm.xlu0 %461, %v457
        %v463 = vpop.permute.xlu0 %462
        %v466 = vmul.f32 %v382, %v456
        %v467 = vmul.f32 %v385, %v463
        %469 = vset.pattern.permute.xlu0 16
        %470 = vperm.xlu0 %469, %v331
        %v471 = vpop.permute.xlu0 %470
        %475 = vset.pattern.permute.xlu0 0
        %476 = vperm.xlu0 %475, %v466
        %v477 = vpop.permute.xlu0 %476
        %478 = vset.pattern.permute.xlu0 0
        %479 = vperm.xlu0 %478, %v467
        %v480 = vpop.permute.xlu0 %479
        %v481 = vperm.slane %v477, %v441
        %v482 = vperm.slane %v480, %v441
        %v483 = vsel %vm444, %v482, %v481
        %v485 = vmul.f32 %v471, %v483
        %vm486 = vcmask 58368
        %v487 = vsel %vm486, %v485, -inf
        %488 = vmax.xlane.f32.xlu0 %v487
        %v489 = vpop.xlane.xlu0 %488
        %v490 = vsub.f32 %v485, %v489
        %v491 = vmul.f32 %v490, 1.442695
        %v492 = vpow.pop %v491
        %v493 = vsel %vm486, %v492, 0.0
        %494 = vadd.xlane.f32.xlu0 %v493
        %v495 = vpop.xlane.xlu0 %494
        %v496 = vrcp.pop %v495
        %v497 = vmul.f32 %v492, %v496
        %v498 = vld [vmem:[#allocation2] sm:$0x3]
        %500 = vset.pattern.permute.xlu0 17
        %501 = vperm.xlu0 %500, %v350
        %v502 = vpop.permute.xlu0 %501
        %v504 = vmul.f32 %v502, %v497
        %v505 = vsub.f32 1.0, %v350
        %507 = vset.pattern.permute.xlu0 17
        %508 = vperm.xlu0 %507, %v505
        %v509 = vpop.permute.xlu0 %508
        %v511 = vmul.f32 %v509, %v498
        %v512 = vadd.f32 %v504, %v511
        %v513 = vld [vmem:[%s5] sm:$0xff]
        %vm514 = vcmask 64512
        %v516 = vsel %vm514, %v512, 0
        %518 = vmatpush.msra.mxu0 0.0
        %519 = vmatpush.msra.mxu0 0.0
        %520 = vmatpush.msra.mxu0 0.0
        %521 = vmatpush.msra.mxu0 0.0
        %522 = vmatpush.msra.mxu0 0.0
        %523 = vmatpush.msra.mxu0 0.0
        %524 = vmatpush.msra.mxu0 0.0
        %525 = vmatpush.msra.mxu0 0.0
        %526 = vmatpush.msra.mxu0 0.0
        %527 = vmatpush.msra.mxu0 0.0
        %528 = vmatpush.msra.mxu0 0.0
        %529 = vmatpush.msra.mxu0 0.0
        %530 = vmatpush.msra.mxu0 0.0
        %531 = vmatpush.msra.mxu0 0.0
        %532 = vmatpush.msra.mxu0 0.0
        %533 = vmatpush.msra.mxu0 %v513
        %534 = vmatmul.f32.gmra.mxu0 %v516
        %v535 = vpop.f32.mrf.mxu0
        %v536 = vadd.f32 0.0, %v535
        %537 = vdwg.mxu0
        %539 = vset.pattern.permute.xlu0 18
        %540 = vperm.xlu0 %539, %v367
        %v541 = vpop.permute.xlu0 %540
        %v543 = vmul.f32 %v541, %v536
        %v544 = vadd.f32 %v543, 0.0
        %s545 = scalar_lea.vmem %s5, 8
        %v546 = vld [vmem:[%s545] sm:$0xff]
        %547 = vmatpush.msra.mxu0 0.0
        %548 = vmatpush.msra.mxu0 0.0
        %549 = vmatpush.msra.mxu0 0.0
        %550 = vmatpush.msra.mxu0 0.0
        %551 = vmatpush.msra.mxu0 0.0
        %552 = vmatpush.msra.mxu0 0.0
        %553 = vmatpush.msra.mxu0 0.0
        %554 = vmatpush.msra.mxu0 0.0
        %555 = vmatpush.msra.mxu0 0.0
        %556 = vmatpush.msra.mxu0 0.0
        %557 = vmatpush.msra.mxu0 0.0
        %558 = vmatpush.msra.mxu0 0.0
        %559 = vmatpush.msra.mxu0 0.0
        %560 = vmatpush.msra.mxu0 0.0
        %561 = vmatpush.msra.mxu0 0.0
        %562 = vmatpush.msra.mxu0 %v546
        %563 = vmatmul.f32.gmra.mxu0 %v516
        %v564 = vpop.f32.mrf.mxu0
        %v565 = vadd.f32 0.0, %v564
        %566 = vdwg.mxu0
        %567 = vset.pattern.permute.xlu0 19
        %568 = vperm.xlu0 %567, %v367
        %v569 = vpop.permute.xlu0 %568
        %v571 = vmul.f32 %v569, %v565
        %v572 = vadd.f32 %v544, %v571
        %s573 = scalar_lea.vmem %s5, 16
        %v574 = vld [vmem:[%s573] sm:$0xff]
        %575 = vmatpush.msra.mxu0 0.0
        %576 = vmatpush.msra.mxu0 0.0
        %577 = vmatpush.msra.mxu0 0.0
        %578 = vmatpush.msra.mxu0 0.0
        %579 = vmatpush.msra.mxu0 0.0
        %580 = vmatpush.msra.mxu0 0.0
        %581 = vmatpush.msra.mxu0 0.0
        %582 = vmatpush.msra.mxu0 0.0
        %583 = vmatpush.msra.mxu0 0.0
        %584 = vmatpush.msra.mxu0 0.0
        %585 = vmatpush.msra.mxu0 0.0
        %586 = vmatpush.msra.mxu0 0.0
        %587 = vmatpush.msra.mxu0 0.0
        %588 = vmatpush.msra.mxu0 0.0
        %589 = vmatpush.msra.mxu0 0.0
        %590 = vmatpush.msra.mxu0 %v574
        %591 = vmatmul.f32.gmra.mxu0 %v516
        %v592 = vpop.f32.mrf.mxu0
        %v593 = vadd.f32 0.0, %v592
        %594 = vdwg.mxu0
        %595 = vset.pattern.permute.xlu0 20
        %596 = vperm.xlu0 %595, %v367
        %v597 = vpop.permute.xlu0 %596
        %v599 = vmul.f32 %v597, %v593
        %v600 = vadd.f32 %v572, %v599
        %v601 = vlog2.pop %v600
        %v602 = vmul.f32 %v601, 0.6931472
        %604 = vset.pattern.permute.xlu0 21
        %605 = vperm.xlu0 %604, %v368
        %v606 = vpop.permute.xlu0 %605
        %v608 = vmul.f32 %v606, %v602
        %v609 = vmul.f32 %v608, 1.442695
        %v610 = vpow.pop %v609
        %v611 = vsel %vm486, %v610, 0.0
        %612 = vadd.xlane.f32.xlu0 %v611
        %v613 = vpop.xlane.xlu0 %612
        %v614 = vrcp.pop %v613
        %v615 = vmul.f32 %v610, %v614
        %616 = vst.msk [vmem:[#allocation2] sm:$0x3] %vm486, %v615
        %s617 = smul.u32 %s21, 2
        %s618 = scalar_lea.vmem [#allocation6], %s617
        %619 = vst.msk [vmem:[%s618] sm:$0x3] %vm486, %v615
        // Predicated region
        $region53: #{tpu_custom_call.1} parent=43 // pred_check
          %p620 = pneg %p170
        $region54: #{tpu_custom_call.1} parent=43 // pred_check_branch
          %622 = sbr.rel (%p620) target = $region56
        $region55: #{tpu_custom_call.1} parent=43 // pred_region
          %624 = vsyncadd [#allocation5], 0
          %s625 = sshll.u32 [#allocation6], 4
          %s626 = int_to_ptr.vmem [resolvable:$true] %s625
          %s627 = sshll.u32 %s6, 4
          %s628 = int_to_ptr.hbm [resolvable:$true] %s627
          %633 = dma.vmem_to_hbm [thread:$0]  %s626, 256, %s628, [#allocation5], 32, 32, 2
        $region56: #{tpu_custom_call.1} parent=43 // pred_fallthru
          _
        // Predicated region
        $region57: #{tpu_custom_call.1} parent=43 // pred_check
          %p634 = pneg %p170
        $region58: #{tpu_custom_call.1} parent=43 // pred_check_branch
          %636 = sbr.rel (%p634) target = $region60
        $region59: #{tpu_custom_call.1} parent=43 // pred_region
          %638 = dma.done [#allocation5], 256
        $region60: #{tpu_custom_call.1} parent=43 // pred_fallthru
          _
      $region44: #{tpu_custom_call.1} parent=5 // pred_fallthru
        _
      %p639 = scmp.le.s32.totalorder 2, %s16
      // Predicated region
      $region61: #{tpu_custom_call.1} parent=5 // pred_check
        %p640 = pneg %p639
      $region62: #{tpu_custom_call.1} parent=5 // pred_check_branch
        %642 = sbr.rel (%p640) target = $region64
      $region63: #{tpu_custom_call.1} parent=5 // pred_region
        %s643 = ssub.s32 %s16, 2
      $region64: #{tpu_custom_call.1} parent=5 // pred_fallthru
        _
    $region6: #{tpu_custom_call.1} parent=1 // loop_footer
      %s20 = sadd.s32 1, %s16
    $region7: #{tpu_custom_call.1} parent=1 // loop_footer_branch
      %15 = sbr.rel target = $region3
    $region8: #{tpu_custom_call.1} parent=1 // loop_exit
      _
    %644 = vsyncpa [#allocation4], 1
    %s645 = scalar_lea.sflag [#allocation4], 1
    %646 = vsyncpa %s645, 1
    %647 = vsyncpa [#allocation5], 1
    %s648 = scalar_lea.sflag [#allocation5], 1
    %649 = vsyncpa %s648, 1

</llo_original>
